<compile_context>
chip_gen: v5e
topology: v5e:2x2
jax: 0.10.0
libtpu: 0.0.40
codegen_flags: <defaults>
</compile_context>

<pallas_src>
import functools

import jax
import jax.numpy as jnp
from jax import lax
from jax.experimental import pallas as pl
from jax.experimental.pallas import tpu as pltpu


def _mlp_kernel(x_ref, w1_ref, b1_ref, w2_ref, b2_ref, w3_ref, b3_ref, o_ref):
    # fc1 + tanh  (MXU, f32 accumulation; activation kept in f32 for v5e EUP).
    h1 = jnp.tanh(
        jnp.dot(x_ref[...], w1_ref[...], preferred_element_type=jnp.float32)
        + b1_ref[...]
    )
    # fc2 + tanh  (cast h1 to the MXU operand dtype, accumulate in f32).
    h2 = jnp.tanh(
        jnp.dot(h1.astype(w2_ref.dtype), w2_ref[...],
                preferred_element_type=jnp.float32)
        + b2_ref[...]
    )
    # fc3 has a single output unit.  Instead of a (block_b, H2) @ (H2, 1)
    # matmul (1 MXU output column + a (block_b, 1) masked store), contract in
    # the transposed orientation: (1, H2) x (block_b, H2) over H2 gives a
    # lane-dense (1, block_b) row directly (same trans-B dot_general pattern
    # as the flash-attention kernels).
    logits = (
        lax.dot_general(
            w3_ref[...], h2, (((1,), (1,)), ((), ())),
            preferred_element_type=jnp.float32,
        )
        + b3_ref[...]
    )  # (1, block_b)
    o_ref[...] = jax.nn.sigmoid(logits).astype(o_ref.dtype)


@functools.partial(jax.jit, static_argnames=("block_b", "use_bf16"))
def net_unmask_forward(x, w1, b1, w2, b2, w3, b3, *, block_b=256, use_bf16=True):
    """sigmoid(fc3(tanh(fc2(tanh(fc1(x)))))); returns a (B, 1) f32 array."""
    B, d_in = x.shape
    h1_dim = w1.shape[1]
    h2_dim = w2.shape[1]
    if w3.shape[0] != 1:          # also accept the (H2, 1) column layout
        w3 = w3.T
    assert w3.shape == (1, h2_dim)
    assert b3.shape == (1, 1)

    # Batch tile: as large as possible (per-grid-step overhead ~0.35us), but
    # clamp to B for tiny batches.  Lane-dense output tiles must be a multiple
    # of 128 (which also satisfies the sublane-8 constraint on the x tile)
    # unless the tile spans the whole batch.
    block_b = min(block_b, B)
    if B % block_b != 0:
        raise ValueError(f"batch {B} must be divisible by block_b={block_b}")
    if block_b != B and block_b % 128 != 0:
        raise ValueError(
            "block_b must be a multiple of 128 (lane-dense output tile) "
            "unless it spans the whole batch"
        )

    mxu_dtype = jnp.bfloat16 if use_bf16 else jnp.float32
    itemsize = 2 if use_bf16 else 4
    xq = x.astype(mxu_dtype)
    w1q = w1.astype(mxu_dtype)
    w2q = w2.astype(mxu_dtype)
    b1 = b1.astype(jnp.float32)
    b2 = b2.astype(jnp.float32)
    w3 = w3.astype(jnp.float32)
    b3 = b3.astype(jnp.float32)

    grid = (B // block_b,)
    # Constant operands: same block every step -> DMA'd once, stay resident.
    const = lambda shape: pl.BlockSpec(shape, lambda i: (0, 0))

    cost = pl.CostEstimate(
        flops=2 * B * (d_in * h1_dim + h1_dim * h2_dim + h2_dim),
        transcendentals=B * (h1_dim + h2_dim + 1),
        bytes_accessed=(
            B * d_in * itemsize                       # x
            + d_in * h1_dim * itemsize + h1_dim * 4   # W1, b1
            + h1_dim * h2_dim * itemsize + h2_dim * 4 # W2, b2
            + h2_dim * 4 + 4                          # W3 row, b3
            + B * 4                                   # output
        ),
    )

    out_row = pl.pallas_call(
        _mlp_kernel,
        out_shape=jax.ShapeDtypeStruct((1, B), jnp.float32),
        grid_spec=pltpu.PrefetchScalarGridSpec(
            num_scalar_prefetch=0,
            grid=grid,
            in_specs=[
                pl.BlockSpec((block_b, d_in), lambda i: (i, 0)),  # x tile
                const((d_in, h1_dim)),                            # W1
                const((1, h1_dim)),                               # b1
                const((h1_dim, h2_dim)),                          # W2
                const((1, h2_dim)),                               # b2
                const((1, h2_dim)),                               # W3 row
                const((1, 1)),                                    # b3
            ],
            out_specs=pl.BlockSpec((1, block_b), lambda i: (0, i)),
        ),
        compiler_params=pltpu.CompilerParams(
            dimension_semantics=("parallel",),
        ),
        cost_estimate=cost,
    )(xq, w1q, b1, w2q, b2, w3, b3)

    # (1, B) row-major has the same element order as (B, 1): plain reshape.
    return out_row.reshape(B, 1)


def _init_linear(key, fan_in, fan_out):
    """PyTorch-style nn.Linear init: U(-1/sqrt(fan_in), +1/sqrt(fan_in)).
    Weight is returned already transposed to (fan_in, fan_out), bias as (1, fan_out)."""
    kw, kb = jax.random.split(key)
    bound = 1.0 / jnp.sqrt(jnp.float32(fan_in))
    w = jax.random.uniform(kw, (fan_in, fan_out), jnp.float32, -bound, bound)
    b = jax.random.uniform(kb, (1, fan_out), jnp.float32, -bound, bound)
    return w, b


if __name__ == "__main__":
    # layer_infos implies: D_in = len(layer_infos[0]), H1 = len(layer_infos[1]),
    # H2 = len(layer_infos[2]); output dim is 1.
    B, D_IN, H1, H2 = 512, 32, 64, 32
    BLOCK_B = 256  # 2 grid steps -> both TensorCores get work on v7x

    key = jax.random.PRNGKey(0)
    kx, k1, k2, k3 = jax.random.split(key, 4)

    x = jax.random.normal(kx, (B, D_IN), jnp.float32)
    w1, b1 = _init_linear(k1, D_IN, H1)
    w2, b2 = _init_linear(k2, H1, H2)
    w3, b3 = _init_linear(k3, H2, 1)   # (H2, 1), (1, 1)

    y = net_unmask_forward(x, w1, b1, w2, b2, w3, b3, block_b=BLOCK_B)
    y = jax.block_until_ready(y)
    assert y.shape == (B, 1)

    # Pure-JAX reference of the same forward pass with the same bf16 MXU
    # operands and f32 accumulation / f32 activations.
    xb, w1b, w2b = (a.astype(jnp.bfloat16) for a in (x, w1, w2))
    r1 = jnp.tanh(jnp.dot(xb, w1b, preferred_element_type=jnp.float32) + b1)
    r2 = jnp.tanh(
        jnp.dot(r1.astype(jnp.bfloat16), w2b, preferred_element_type=jnp.float32) + b2
    )
    ref = jax.nn.sigmoid(jnp.sum(r2 * w3.T, axis=-1, keepdims=True) + b3)

    assert jnp.allclose(y, ref, atol=2e-3, rtol=2e-3), "mismatch vs reference"
    print("KERNEL_OK")
</pallas_src>

<mosaic_0001>
module attributes {stable_mosaic.version = 11 : i64} {
  func.func @_mlp_kernel(%arg0: i32, %arg1: memref<256x32xbf16, #tpu.memory_space<vmem>>, %arg2: memref<32x64xbf16, #tpu.memory_space<vmem>>, %arg3: memref<1x64xf32, #tpu.memory_space<vmem>>, %arg4: memref<64x32xbf16, #tpu.memory_space<vmem>>, %arg5: memref<1x32xf32, #tpu.memory_space<vmem>>, %arg6: memref<1x32xf32, #tpu.memory_space<vmem>>, %arg7: memref<1x1xf32, #tpu.memory_space<vmem>>, %arg8: memref<1x256xf32, #tpu.memory_space<vmem>>) attributes {dimension_semantics = [#tpu.dimension_semantics<parallel>], iteration_bounds = array<i64: 2>, scalar_prefetch = 0 : i64, scratch_operands = 0 : i64, tpu.core_type = #tpu.core_type<tc>, window_params = [{transform_indices = @transform_0, window_bounds = array<i64: 256, 32>}, {pipeline_mode = #tpu.pipeline_mode<synchronous>, transform_indices = @transform_1, window_bounds = array<i64: 32, 64>}, {pipeline_mode = #tpu.pipeline_mode<synchronous>, transform_indices = @transform_2, window_bounds = array<i64: 1, 64>}, {pipeline_mode = #tpu.pipeline_mode<synchronous>, transform_indices = @transform_3, window_bounds = array<i64: 64, 32>}, {pipeline_mode = #tpu.pipeline_mode<synchronous>, transform_indices = @transform_4, window_bounds = array<i64: 1, 32>}, {pipeline_mode = #tpu.pipeline_mode<synchronous>, transform_indices = @transform_5, window_bounds = array<i64: 1, 32>}, {pipeline_mode = #tpu.pipeline_mode<synchronous>, transform_indices = @transform_6, window_bounds = array<i64: 1, 1>}, {transform_indices = @transform_7, window_bounds = array<i64: 1, 256>}]} {
    %c0 = arith.constant 0 : index
    %c0_0 = arith.constant 0 : index
    %0 = vector.load %arg1[%c0, %c0_0] : memref<256x32xbf16, #tpu.memory_space<vmem>>, vector<256x32xbf16>
    %c0_1 = arith.constant 0 : index
    %c0_2 = arith.constant 0 : index
    %1 = vector.load %arg2[%c0_1, %c0_2] : memref<32x64xbf16, #tpu.memory_space<vmem>>, vector<32x64xbf16>
    %cst = arith.constant dense<0.000000e+00> : vector<256x64xf32>
    %2 = tpu.matmul %0, %1, %cst {dimension_numbers = #tpu.dot_dimension_numbers<[1], [0], [0], [1], [0, 0, 1, 1], [], []>} : vector<256x32xbf16>, vector<32x64xbf16>, vector<256x64xf32> -> vector<256x64xf32>
    %c0_3 = arith.constant 0 : index
    %c0_4 = arith.constant 0 : index
    %3 = vector.load %arg3[%c0_3, %c0_4] : memref<1x64xf32, #tpu.memory_space<vmem>>, vector<1x64xf32>
    %4 = vector.broadcast %3 : vector<1x64xf32> to vector<256x64xf32>
    %5 = arith.addf %2, %4 : vector<256x64xf32>
    %6 = math.tanh %5 : vector<256x64xf32>
    %7 = arith.truncf %6 : vector<256x64xf32> to vector<256x64xbf16>
    %c0_5 = arith.constant 0 : index
    %c0_6 = arith.constant 0 : index
    %8 = vector.load %arg4[%c0_5, %c0_6] : memref<64x32xbf16, #tpu.memory_space<vmem>>, vector<64x32xbf16>
    %cst_7 = arith.constant dense<0.000000e+00> : vector<256x32xf32>
    %9 = tpu.matmul %7, %8, %cst_7 {dimension_numbers = #tpu.dot_dimension_numbers<[1], [0], [0], [1], [0, 0, 1, 1], [], []>} : vector<256x64xbf16>, vector<64x32xbf16>, vector<256x32xf32> -> vector<256x32xf32>
    %c0_8 = arith.constant 0 : index
    %c0_9 = arith.constant 0 : index
    %10 = vector.load %arg5[%c0_8, %c0_9] : memref<1x32xf32, #tpu.memory_space<vmem>>, vector<1x32xf32>
    %11 = vector.broadcast %10 : vector<1x32xf32> to vector<256x32xf32>
    %12 = arith.addf %9, %11 : vector<256x32xf32>
    %13 = math.tanh %12 : vector<256x32xf32>
    %c0_10 = arith.constant 0 : index
    %c0_11 = arith.constant 0 : index
    %14 = vector.load %arg6[%c0_10, %c0_11] : memref<1x32xf32, #tpu.memory_space<vmem>>, vector<1x32xf32>
    %cst_12 = arith.constant dense<0.000000e+00> : vector<1x256xf32>
    %15 = tpu.matmul %14, %13, %cst_12 {dimension_numbers = #tpu.dot_dimension_numbers<[1], [1], [0], [0], [0, 0, 1, 0], [], []>} : vector<1x32xf32>, vector<256x32xf32>, vector<1x256xf32> -> vector<1x256xf32>
    %c0_13 = arith.constant 0 : index
    %c0_14 = arith.constant 0 : index
    %16 = vector.load %arg7[%c0_13, %c0_14] : memref<1x1xf32, #tpu.memory_space<vmem>>, vector<1x1xf32>
    %17 = vector.broadcast %16 : vector<1x1xf32> to vector<1x256xf32>
    %18 = arith.addf %15, %17 : vector<1x256xf32>
    %19 = arith.negf %18 : vector<1x256xf32>
    %20 = math.exp %19 : vector<1x256xf32>
    %cst_15 = arith.constant 1.000000e+00 : f32
    %21 = vector.broadcast %cst_15 : f32 to vector<1x256xf32>
    %22 = arith.addf %21, %20 : vector<1x256xf32>
    %23 = arith.divf %21, %22 : vector<1x256xf32>
    %c0_16 = arith.constant 0 : index
    %c0_17 = arith.constant 0 : index
    %24 = vector.load %arg8[%c0_16, %c0_17] : memref<1x256xf32, #tpu.memory_space<vmem>>, vector<1x256xf32>
    tpu.vector_store %arg8[%c0_16, %c0_17], %23 {strides = array<i32>} : memref<1x256xf32, #tpu.memory_space<vmem>>, vector<1x256xf32>,
    return
  }
  func.func @transform_0(%arg0: i32) -> (i32, i32) {
    %c0_i32 = arith.constant 0 : i32
    %c0_i32_0 = arith.constant 0 : i32
    return %arg0, %c0_i32 : i32, i32
  }
  func.func @transform_1(%arg0: i32) -> (i32, i32) {
    %c0_i32 = arith.constant 0 : i32
    %c0_i32_0 = arith.constant 0 : i32
    %c0_i32_1 = arith.constant 0 : i32
    return %c0_i32, %c0_i32_0 : i32, i32
  }
  func.func @transform_2(%arg0: i32) -> (i32, i32) {
    %c0_i32 = arith.constant 0 : i32
    %c0_i32_0 = arith.constant 0 : i32
    %c0_i32_1 = arith.constant 0 : i32
    return %c0_i32, %c0_i32_0 : i32, i32
  }
  func.func @transform_3(%arg0: i32) -> (i32, i32) {
    %c0_i32 = arith.constant 0 : i32
    %c0_i32_0 = arith.constant 0 : i32
    %c0_i32_1 = arith.constant 0 : i32
    return %c0_i32, %c0_i32_0 : i32, i32
  }
  func.func @transform_4(%arg0: i32) -> (i32, i32) {
    %c0_i32 = arith.constant 0 : i32
    %c0_i32_0 = arith.constant 0 : i32
    %c0_i32_1 = arith.constant 0 : i32
    return %c0_i32, %c0_i32_0 : i32, i32
  }
  func.func @transform_5(%arg0: i32) -> (i32, i32) {
    %c0_i32 = arith.constant 0 : i32
    %c0_i32_0 = arith.constant 0 : i32
    %c0_i32_1 = arith.constant 0 : i32
    return %c0_i32, %c0_i32_0 : i32, i32
  }
  func.func @transform_6(%arg0: i32) -> (i32, i32) {
    %c0_i32 = arith.constant 0 : i32
    %c0_i32_0 = arith.constant 0 : i32
    %c0_i32_1 = arith.constant 0 : i32
    return %c0_i32, %c0_i32_0 : i32, i32
  }
  func.func @transform_7(%arg0: i32) -> (i32, i32) {
    %c0_i32 = arith.constant 0 : i32
    %c0_i32_0 = arith.constant 0 : i32
    return %c0_i32, %arg0 : i32, i32
  }
}

</mosaic_0001>

<llo_original>
// kernel: net_unmask_forward.1
$region0: #{net_unmask_forward.1}
  #allocation0 [shape = 'u32[]', space=smem, size = 0x4, offset = 0x4, fixed_abs, tag = 'smem constant byte address 0x4 - core index']
  #allocation1 [shape = 'u32[72,128]{1,0:T(1,128)}', space=vmem, size = 0x9000, scoped, tag = 'internal scratch']
  #allocation2 [shape = 'f32[1,1]{1,0:T(1,128)S(1)}', space=vmem, size = 0x200, scoped, tag = 'scoped memory for net_unmask_forward.1']
  %s0 = inlined_call_operand.vmem [shape: bf16[512,32], index: 0, kind: input, shape index: {}]
  %s1 = inlined_call_operand.vmem [shape: bf16[32,64], index: 1, kind: input, shape index: {}]
  %s2 = inlined_call_operand.vmem [shape: f32[1,64], index: 2, kind: input, shape index: {}]
  %s3 = inlined_call_operand.vmem [shape: bf16[64,32], index: 3, kind: input, shape index: {}]
  %s4 = inlined_call_operand.vmem [shape: f32[1,32], index: 4, kind: input, shape index: {}]
  %s5 = inlined_call_operand.vmem [shape: f32[1,32], index: 5, kind: input, shape index: {}]
  %s6 = inlined_call_operand.<no memory space> [shape: f32[1,1], index: 6, kind: input, shape index: {}]
  %s7 = inlined_call_operand.hbm [shape: f32[1,512], index: 7, kind: output, shape index: {}]
  %s8 = sld [smem:[#allocation0]]
  $region61: #{net_unmask_forward.1} parent=0
    _
  %s10 = ssub.s32 1, %s8
  %s11 = scalar_select 0, %s10, %s8
  %v12 = vstv %s6
  %13 = vst [vmem:[#allocation2] sm:$0x1] %v12
  $region1: #{net_unmask_forward.1} parent=0
    #allocation3 [shape = 'u8[2048]{0}', space=vmem, size = 0x800, scoped, tag = 'output window, operand 0']
    #allocation4 [shape = 's32[2]{0}', space=sflag, size = 0x8, scoped, tag = 'scoped memory for net_unmask_forward.1']
    %14 = vsyncpa [#allocation4], 0
    %s15 = scalar_lea.sflag [#allocation4], 1
    %16 = vsyncpa %s15, 0
    loop: start=0, step=1, limit=4
    $region2: #{net_unmask_forward.1} parent=1 // loop_pre_header
      _
    $region3: #{net_unmask_forward.1} parent=1 // loop_header
      %s18 = sphi 0, %s22
      %p19 = scmp.ge.s32.totalorder %s18, 4
      %s28 = sphi 0, %s30
      %s31 = sphi 0, %s28
      %s32 = sphi 0, %s31
      %s48 = sphi 0, %s32
      %s52 = sphi 0, %s52
      %s54 = sphi 0, %s52
      %s55 = sphi 0, %s54
      %s69 = sphi 0, %s55
      %s73 = sphi 0, %s73
      %s75 = sphi 0, %s73
      %s76 = sphi 0, %s75
      %s90 = sphi 0, %s76
      %s94 = sphi 0, %s94
      %s96 = sphi 0, %s94
      %s97 = sphi 0, %s96
      %s111 = sphi 0, %s97
      %s115 = sphi 0, %s115
      %s117 = sphi 0, %s115
      %s118 = sphi 0, %s117
      %s132 = sphi 0, %s118
      %s136 = sphi 0, %s136
      %s138 = sphi 0, %s136
      %s139 = sphi 0, %s138
      %s153 = sphi 0, %s139
      %s157 = sphi 0, %s157
      %s159 = sphi 0, %s157
      %s160 = sphi 0, %s159
      %s174 = sphi 0, %s160
      %s180 = sphi 0, %s182
      %s183 = sphi 0, %s180
      %s184 = sphi 0, %s183
      %s200 = sphi 0, %s184
    $region4: #{net_unmask_forward.1} parent=1 // loop_header_branch
      %21 = sbr.rel (%p19) target = $region8
    $region5: #{net_unmask_forward.1} parent=1 // loop_body
      %s23 = ssub.s32 %s18, 1
      %s24 = ssub.s32 %s18, 2
      %s25 = sadd.s32 %s18, 1
      %s26 = ssub.s32 %s18, %s25
      %p27 = scmp.eq.s32.totalorder %s26, 0
      %s29 = sadd.s32 %s28, 1
      %s30 = scalar_select %p27, %s28, %s29
      %p33 = pneg %p27
      %p34 = scmp.eq.s32.totalorder %s18, 1
      %p35 = por %p33, %p34
      %p36 = scmp.ne.s32.totalorder %s28, %s31
      %p37 = scmp.eq.s32.totalorder %s18, 0
      %p38 = por %p36, %p37
      %p39 = scmp.ne.s32.totalorder %s28, %s31
      %p40 = scmp.eq.s32.totalorder %s23, 1
      %p41 = por %p39, %p40
      %p42 = scmp.ne.s32.totalorder %s31, %s32
      %p43 = scmp.eq.s32.totalorder %s23, 0
      %p44 = por %p42, %p43
      %p45 = scmp.ne.s32.totalorder %s31, %s32
      %p46 = scmp.eq.s32.totalorder %s24, 1
      %p47 = por %p45, %p46
      %p49 = scmp.ne.s32.totalorder %s32, %s48
      %p50 = scmp.eq.s32.totalorder %s24, 0
      %p51 = por %p49, %p50
      %s53 = sadd.s32 %s52, 1
      %p56 = scmp.eq.s32.totalorder %s18, 1
      %p57 = scmp.ne.s32.totalorder %s52, %s54
      %p58 = scmp.eq.s32.totalorder %s18, 0
      %p59 = por %p57, %p58
      %p60 = scmp.ne.s32.totalorder %s52, %s54
      %p61 = scmp.eq.s32.totalorder %s23, 1
      %p62 = por %p60, %p61
      %p63 = scmp.ne.s32.totalorder %s54, %s55
      %p64 = scmp.eq.s32.totalorder %s23, 0
      %p65 = por %p63, %p64
      %p66 = scmp.ne.s32.totalorder %s54, %s55
      %p67 = scmp.eq.s32.totalorder %s24, 1
      %p68 = por %p66, %p67
      %p70 = scmp.ne.s32.totalorder %s55, %s69
      %p71 = scmp.eq.s32.totalorder %s24, 0
      %p72 = por %p70, %p71
      %s74 = sadd.s32 %s73, 1
      %p77 = scmp.eq.s32.totalorder %s18, 1
      %p78 = scmp.ne.s32.totalorder %s73, %s75
      %p79 = scmp.eq.s32.totalorder %s18, 0
      %p80 = por %p78, %p79
      %p81 = scmp.ne.s32.totalorder %s73, %s75
      %p82 = scmp.eq.s32.totalorder %s23, 1
      %p83 = por %p81, %p82
      %p84 = scmp.ne.s32.totalorder %s75, %s76
      %p85 = scmp.eq.s32.totalorder %s23, 0
      %p86 = por %p84, %p85
      %p87 = scmp.ne.s32.totalorder %s75, %s76
      %p88 = scmp.eq.s32.totalorder %s24, 1
      %p89 = por %p87, %p88
      %p91 = scmp.ne.s32.totalorder %s76, %s90
      %p92 = scmp.eq.s32.totalorder %s24, 0
      %p93 = por %p91, %p92
      %s95 = sadd.s32 %s94, 1
      %p98 = scmp.eq.s32.totalorder %s18, 1
      %p99 = scmp.ne.s32.totalorder %s94, %s96
      %p100 = scmp.eq.s32.totalorder %s18, 0
      %p101 = por %p99, %p100
      %p102 = scmp.ne.s32.totalorder %s94, %s96
      %p103 = scmp.eq.s32.totalorder %s23, 1
      %p104 = por %p102, %p103
      %p105 = scmp.ne.s32.totalorder %s96, %s97
      %p106 = scmp.eq.s32.totalorder %s23, 0
      %p107 = por %p105, %p106
      %p108 = scmp.ne.s32.totalorder %s96, %s97
      %p109 = scmp.eq.s32.totalorder %s24, 1
      %p110 = por %p108, %p109
      %p112 = scmp.ne.s32.totalorder %s97, %s111
      %p113 = scmp.eq.s32.totalorder %s24, 0
      %p114 = por %p112, %p113
      %s116 = sadd.s32 %s115, 1
      %p119 = scmp.eq.s32.totalorder %s18, 1
      %p120 = scmp.ne.s32.totalorder %s115, %s117
      %p121 = scmp.eq.s32.totalorder %s18, 0
      %p122 = por %p120, %p121
      %p123 = scmp.ne.s32.totalorder %s115, %s117
      %p124 = scmp.eq.s32.totalorder %s23, 1
      %p125 = por %p123, %p124
      %p126 = scmp.ne.s32.totalorder %s117, %s118
      %p127 = scmp.eq.s32.totalorder %s23, 0
      %p128 = por %p126, %p127
      %p129 = scmp.ne.s32.totalorder %s117, %s118
      %p130 = scmp.eq.s32.totalorder %s24, 1
      %p131 = por %p129, %p130
      %p133 = scmp.ne.s32.totalorder %s118, %s132
      %p134 = scmp.eq.s32.totalorder %s24, 0
      %p135 = por %p133, %p134
      %s137 = sadd.s32 %s136, 1
      %p140 = scmp.eq.s32.totalorder %s18, 1
      %p141 = scmp.ne.s32.totalorder %s136, %s138
      %p142 = scmp.eq.s32.totalorder %s18, 0
      %p143 = por %p141, %p142
      %p144 = scmp.ne.s32.totalorder %s136, %s138
      %p145 = scmp.eq.s32.totalorder %s23, 1
      %p146 = por %p144, %p145
      %p147 = scmp.ne.s32.totalorder %s138, %s139
      %p148 = scmp.eq.s32.totalorder %s23, 0
      %p149 = por %p147, %p148
      %p150 = scmp.ne.s32.totalorder %s138, %s139
      %p151 = scmp.eq.s32.totalorder %s24, 1
      %p152 = por %p150, %p151
      %p154 = scmp.ne.s32.totalorder %s139, %s153
      %p155 = scmp.eq.s32.totalorder %s24, 0
      %p156 = por %p154, %p155
      %s158 = sadd.s32 %s157, 1
      %p161 = scmp.eq.s32.totalorder %s18, 1
      %p162 = scmp.ne.s32.totalorder %s157, %s159
      %p163 = scmp.eq.s32.totalorder %s18, 0
      %p164 = por %p162, %p163
      %p165 = scmp.ne.s32.totalorder %s157, %s159
      %p166 = scmp.eq.s32.totalorder %s23, 1
      %p167 = por %p165, %p166
      %p168 = scmp.ne.s32.totalorder %s159, %s160
      %p169 = scmp.eq.s32.totalorder %s23, 0
      %p170 = por %p168, %p169
      %p171 = scmp.ne.s32.totalorder %s159, %s160
      %p172 = scmp.eq.s32.totalorder %s24, 1
      %p173 = por %p171, %p172
      %p175 = scmp.ne.s32.totalorder %s160, %s174
      %p176 = scmp.eq.s32.totalorder %s24, 0
      %p177 = por %p175, %p176
      %s178 = ssub.s32 %s18, %s25
      %p179 = scmp.eq.s32.totalorder %s178, 0
      %s181 = sadd.s32 %s180, 1
      %s182 = scalar_select %p179, %s180, %s181
      %p185 = pneg %p179
      %p186 = scmp.eq.s32.totalorder %s18, 1
      %p187 = por %p185, %p186
      %p188 = scmp.ne.s32.totalorder %s180, %s183
      %p189 = scmp.eq.s32.totalorder %s18, 0
      %p190 = por %p188, %p189
      %p191 = scmp.ne.s32.totalorder %s180, %s183
      %p192 = scmp.eq.s32.totalorder %s23, 1
      %p193 = por %p191, %p192
      %p194 = scmp.ne.s32.totalorder %s183, %s184
      %p195 = scmp.eq.s32.totalorder %s23, 0
      %p196 = por %p194, %p195
      %p197 = scmp.ne.s32.totalorder %s183, %s184
      %p198 = scmp.eq.s32.totalorder %s24, 1
      %p199 = por %p197, %p198
      %p201 = scmp.ne.s32.totalorder %s184, %s200
      %p202 = scmp.eq.s32.totalorder %s24, 0
      %p203 = por %p201, %p202
      %p204 = scmp.le.s32.totalorder 1, %s18
      %p205 = scmp.lt.s32.totalorder %s18, 3
      %p206 = pnand %p204, %p205
      %p207 = pneg %p206
      // Predicated region
      $region9: #{net_unmask_forward.1} parent=5 // pred_check
        _
      $region10: #{net_unmask_forward.1} parent=5 // pred_check_branch
        %209 = sbr.rel (%p206) target = $region12
      $region11: #{net_unmask_forward.1} parent=5 // pred_region
        %s210 = ssub.s32 %s18, 1
        // Predicated region
        $region13: #{net_unmask_forward.1} parent=11 // pred_check
          %p211 = pneg %p65
        $region14: #{net_unmask_forward.1} parent=11 // pred_check_branch
          %213 = sbr.rel (%p211) target = $region16
        $region15: #{net_unmask_forward.1} parent=11 // pred_region
          _
        $region16: #{net_unmask_forward.1} parent=11 // pred_fallthru
          _
        // Predicated region
        $region17: #{net_unmask_forward.1} parent=11 // pred_check
          %p214 = pneg %p86
        $region18: #{net_unmask_forward.1} parent=11 // pred_check_branch
          %216 = sbr.rel (%p214) target = $region20
        $region19: #{net_unmask_forward.1} parent=11 // pred_region
          _
        $region20: #{net_unmask_forward.1} parent=11 // pred_fallthru
          _
        // Predicated region
        $region21: #{net_unmask_forward.1} parent=11 // pred_check
          %p217 = pneg %p107
        $region22: #{net_unmask_forward.1} parent=11 // pred_check_branch
          %219 = sbr.rel (%p217) target = $region24
        $region23: #{net_unmask_forward.1} parent=11 // pred_region
          _
        $region24: #{net_unmask_forward.1} parent=11 // pred_fallthru
          _
        // Predicated region
        $region25: #{net_unmask_forward.1} parent=11 // pred_check
          %p220 = pneg %p128
        $region26: #{net_unmask_forward.1} parent=11 // pred_check_branch
          %222 = sbr.rel (%p220) target = $region28
        $region27: #{net_unmask_forward.1} parent=11 // pred_region
          _
        $region28: #{net_unmask_forward.1} parent=11 // pred_fallthru
          _
        // Predicated region
        $region29: #{net_unmask_forward.1} parent=11 // pred_check
          %p223 = pneg %p149
        $region30: #{net_unmask_forward.1} parent=11 // pred_check_branch
          %225 = sbr.rel (%p223) target = $region32
        $region31: #{net_unmask_forward.1} parent=11 // pred_region
          _
        $region32: #{net_unmask_forward.1} parent=11 // pred_fallthru
          _
        // Predicated region
        $region33: #{net_unmask_forward.1} parent=11 // pred_check
          %p226 = pneg %p170
        $region34: #{net_unmask_forward.1} parent=11 // pred_check_branch
          %228 = sbr.rel (%p226) target = $region36
        $region35: #{net_unmask_forward.1} parent=11 // pred_region
          _
        $region36: #{net_unmask_forward.1} parent=11 // pred_fallthru
          _
      $region12: #{net_unmask_forward.1} parent=5 // pred_fallthru
        _
      %p229 = scmp.lt.s32.totalorder %s18, 2
      // Predicated region
      $region37: #{net_unmask_forward.1} parent=5 // pred_check
        %p230 = pneg %p229
      $region38: #{net_unmask_forward.1} parent=5 // pred_check_branch
        %232 = sbr.rel (%p230) target = $region40
      $region39: #{net_unmask_forward.1} parent=5 // pred_region
        // Predicated region
        $region41: #{net_unmask_forward.1} parent=39 // pred_check
          %p233 = pneg %p38
        $region42: #{net_unmask_forward.1} parent=39 // pred_check_branch
          %235 = sbr.rel (%p233) target = $region44
        $region43: #{net_unmask_forward.1} parent=39 // pred_region
          %s236 = smul.u32 32, %s18
          %p237 = scmp.lt.s32.totalorder %s236, 63
          %s238 = scalar_select %p237, %s236, 63
          %s239 = smul.addr %s238, 4
          %s240 = scalar_lea.vmem %s0, %s239
          %s241 = smul.u32 32, %s18
        $region44: #{net_unmask_forward.1} parent=39 // pred_fallthru
          _
      $region40: #{net_unmask_forward.1} parent=5 // pred_fallthru
        _
      %p242 = scmp.le.s32.totalorder 1, %s18
      %p243 = scmp.lt.s32.totalorder %s18, 3
      %p244 = pnand %p242, %p243
      %p245 = pneg %p244
      // Predicated region
      $region45: #{net_unmask_forward.1} parent=5 // pred_check
        _
      $region46: #{net_unmask_forward.1} parent=5 // pred_check_branch
        %247 = sbr.rel (%p244) target = $region48
      $region47: #{net_unmask_forward.1} parent=5 // pred_region
        %s248 = ssub.s32 %s18, 1
        %s249 = smul.u32 32, %s23
        %p250 = scmp.lt.s32.totalorder %s249, 63
        %s251 = scalar_select %p250, %s249, 63
        %s252 = smul.addr %s251, 4
        %s253 = scalar_lea.vmem %s0, %s252
        %p254 = pneg %p44
        %p255 = pneg %p41
        %p256 = pneg %p65
        %p257 = pneg %p62
        %p258 = pneg %p86
        %p259 = pneg %p83
        %p260 = pneg %p107
        %p261 = pneg %p104
        %p262 = pneg %p128
        %p263 = pneg %p125
        %p264 = pneg %p149
        %p265 = pneg %p146
        %p266 = pneg %p170
        %p267 = pneg %p167
        %p268 = pneg %p196
        %p269 = pneg %p193
        %s270 = sand.u32 %s183, 1
        %s271 = scalar_lea.sflag [#allocation4], %s270
        %s272 = sand.u32 %s183, 1
        %s273 = smul.addr %s272, 2
        %s274 = scalar_lea.vmem [#allocation3], %s273
        %s275 = smul.u32 32, %s23
        %p276 = scmp.lt.s32.totalorder %s275, 63
        %s277 = scalar_select %p276, %s275, 63
        %s278 = smul.addr %s277, 4
        %s279 = scalar_lea.vmem %s0, %s278
        %s280 = smul.u32 32, %s23
        %s281 = smul.u32 2, %s23
        %v283 = vld [vmem:[%s279] sm:$0xf]
        %v284 = vld [vmem:[%s279 + $0x4] sm:$0xf]
        %v285 = vld [vmem:[%s279 + $0x8] sm:$0xf]
        %v286 = vld [vmem:[%s279 + $0xc] sm:$0xf]
        %v287 = vld [vmem:[%s279 + $0x10] sm:$0xf]
        %v288 = vld [vmem:[%s279 + $0x14] sm:$0xf]
        %v289 = vld [vmem:[%s279 + $0x18] sm:$0xf]
        %v290 = vld [vmem:[%s279 + $0x1c] sm:$0xf]
        %v291 = vld [vmem:[%s279 + $0x20] sm:$0xf]
        %v292 = vld [vmem:[%s279 + $0x24] sm:$0xf]
        %v293 = vld [vmem:[%s279 + $0x28] sm:$0xf]
        %v294 = vld [vmem:[%s279 + $0x2c] sm:$0xf]
        %v295 = vld [vmem:[%s279 + $0x30] sm:$0xf]
        %v296 = vld [vmem:[%s279 + $0x34] sm:$0xf]
        %v297 = vld [vmem:[%s279 + $0x38] sm:$0xf]
        %v298 = vld [vmem:[%s279 + $0x3c] sm:$0xf]
        %v299 = vld [vmem:[%s279 + $0x40] sm:$0xf]
        %v300 = vld [vmem:[%s279 + $0x44] sm:$0xf]
        %v301 = vld [vmem:[%s279 + $0x48] sm:$0xf]
        %v302 = vld [vmem:[%s279 + $0x4c] sm:$0xf]
        %v303 = vld [vmem:[%s279 + $0x50] sm:$0xf]
        %v304 = vld [vmem:[%s279 + $0x54] sm:$0xf]
        %v305 = vld [vmem:[%s279 + $0x58] sm:$0xf]
        %v306 = vld [vmem:[%s279 + $0x5c] sm:$0xf]
        %v307 = vld [vmem:[%s279 + $0x60] sm:$0xf]
        %v308 = vld [vmem:[%s279 + $0x64] sm:$0xf]
        %v309 = vld [vmem:[%s279 + $0x68] sm:$0xf]
        %v310 = vld [vmem:[%s279 + $0x6c] sm:$0xf]
        %v311 = vld [vmem:[%s279 + $0x70] sm:$0xf]
        %v312 = vld [vmem:[%s279 + $0x74] sm:$0xf]
        %v313 = vld [vmem:[%s279 + $0x78] sm:$0xf]
        %v314 = vld [vmem:[%s279 + $0x7c] sm:$0xf]
        %v315 = vld [vmem:[%s1] sm:$0xf]
        %v316 = vld [vmem:[%s1 + $0x4] sm:$0xf]
        %v317 = vld [vmem:[%s1 + $0x8] sm:$0xf]
        %v318 = vld [vmem:[%s1 + $0xc] sm:$0xf]
        %v319 = vld [vmem:[%s2] sm:$0x1]
        %v321 = vperm.slane %v319, 0
        %v355 = vunpack.c.l.b16 %v283
        %v356 = vunpack.c.l.b16 %v284
        %v357 = vunpack.c.l.b16 %v285
        %v358 = vunpack.c.l.b16 %v286
        %v359 = vunpack.c.l.b16 %v287
        %v360 = vunpack.c.l.b16 %v288
        %v361 = vunpack.c.l.b16 %v289
        %v362 = vunpack.c.l.b16 %v290
        %v363 = vunpack.c.l.b16 %v291
        %v364 = vunpack.c.l.b16 %v292
        %v365 = vunpack.c.l.b16 %v293
        %v366 = vunpack.c.l.b16 %v294
        %v367 = vunpack.c.l.b16 %v295
        %v368 = vunpack.c.l.b16 %v296
        %v369 = vunpack.c.l.b16 %v297
        %v370 = vunpack.c.l.b16 %v298
        %v371 = vunpack.c.l.b16 %v299
        %v372 = vunpack.c.l.b16 %v300
        %v373 = vunpack.c.l.b16 %v301
        %v374 = vunpack.c.l.b16 %v302
        %v375 = vunpack.c.l.b16 %v303
        %v376 = vunpack.c.l.b16 %v304
        %v377 = vunpack.c.l.b16 %v305
        %v378 = vunpack.c.l.b16 %v306
        %v379 = vunpack.c.l.b16 %v307
        %v380 = vunpack.c.l.b16 %v308
        %v381 = vunpack.c.l.b16 %v309
        %v382 = vunpack.c.l.b16 %v310
        %v383 = vunpack.c.l.b16 %v311
        %v384 = vunpack.c.l.b16 %v312
        %v385 = vunpack.c.l.b16 %v313
        %v386 = vunpack.c.l.b16 %v314
        %v387 = vpack.c.b16 %v356, %v355
        %v388 = vpack.c.b16 %v358, %v357
        %v389 = vpack.c.b16 %v360, %v359
        %v390 = vpack.c.b16 %v362, %v361
        %v391 = vpack.c.b16 %v364, %v363
        %v392 = vpack.c.b16 %v366, %v365
        %v393 = vpack.c.b16 %v368, %v367
        %v394 = vpack.c.b16 %v370, %v369
        %v395 = vpack.c.b16 %v372, %v371
        %v396 = vpack.c.b16 %v374, %v373
        %v397 = vpack.c.b16 %v376, %v375
        %v398 = vpack.c.b16 %v378, %v377
        %v399 = vpack.c.b16 %v380, %v379
        %v400 = vpack.c.b16 %v382, %v381
        %v401 = vpack.c.b16 %v384, %v383
        %v402 = vpack.c.b16 %v386, %v385
        %v407 = vunpack.c.l.b16 %v315
        %v408 = vunpack.c.l.b16 %v316
        %v409 = vunpack.c.l.b16 %v317
        %v410 = vunpack.c.l.b16 %v318
        %v411 = vpack.c.b16 %v408, %v407
        %v412 = vpack.c.b16 %v410, %v409
        %vm415 = vcmask 261120
        %v417 = vsel %vm415, %v387, 0
        %v420 = vsel %vm415, %v388, 0
        %v423 = vsel %vm415, %v389, 0
        %v426 = vsel %vm415, %v390, 0
        %v429 = vsel %vm415, %v391, 0
        %v432 = vsel %vm415, %v392, 0
        %v435 = vsel %vm415, %v393, 0
        %v438 = vsel %vm415, %v394, 0
        %v441 = vsel %vm415, %v395, 0
        %v444 = vsel %vm415, %v396, 0
        %v447 = vsel %vm415, %v397, 0
        %v450 = vsel %vm415, %v398, 0
        %v453 = vsel %vm415, %v399, 0
        %v456 = vsel %vm415, %v400, 0
        %v459 = vsel %vm415, %v401, 0
        %v462 = vsel %vm415, %v402, 0
        %464 = vmatpush.bf16.msra.mxu0 0
        %465 = vmatpush.bf16.msra.mxu0 0
        %466 = vmatpush.bf16.msra.mxu0 0
        %467 = vmatpush.bf16.msra.mxu0 0
        %468 = vmatpush.bf16.msra.mxu0 0
        %469 = vmatpush.bf16.msra.mxu0 0
        %470 = vmatpush.bf16.msra.mxu0 %v412
        %471 = vmatpush.bf16.msra.mxu0 %v411
        %472 = vmatmul.bf16.gmra.mxu0 %v417
        %v473 = vpop.f32.mrf.mxu0
        %v474 = vadd.f32 %v321, %v473
        %v475 = vpop.f32.mrf.mxu0
        %v476 = vadd.f32 %v321, %v475
        %477 = vmatmul.bf16.gmra.mxu0 %v420
        %v478 = vpop.f32.mrf.mxu0
        %v479 = vadd.f32 %v321, %v478
        %v480 = vpop.f32.mrf.mxu0
        %v481 = vadd.f32 %v321, %v480
        %482 = vmatmul.bf16.gmra.mxu0 %v423
        %v483 = vpop.f32.mrf.mxu0
        %v484 = vadd.f32 %v321, %v483
        %v485 = vpop.f32.mrf.mxu0
        %v486 = vadd.f32 %v321, %v485
        %487 = vmatmul.bf16.gmra.mxu0 %v426
        %v488 = vpop.f32.mrf.mxu0
        %v489 = vadd.f32 %v321, %v488
        %v490 = vpop.f32.mrf.mxu0
        %v491 = vadd.f32 %v321, %v490
        %492 = vmatmul.bf16.gmra.mxu0 %v429
        %v493 = vpop.f32.mrf.mxu0
        %v494 = vadd.f32 %v321, %v493
        %v495 = vpop.f32.mrf.mxu0
        %v496 = vadd.f32 %v321, %v495
        %497 = vmatmul.bf16.gmra.mxu0 %v432
        %v498 = vpop.f32.mrf.mxu0
        %v499 = vadd.f32 %v321, %v498
        %v500 = vpop.f32.mrf.mxu0
        %v501 = vadd.f32 %v321, %v500
        %502 = vmatmul.bf16.gmra.mxu0 %v435
        %v503 = vpop.f32.mrf.mxu0
        %v504 = vadd.f32 %v321, %v503
        %v505 = vpop.f32.mrf.mxu0
        %v506 = vadd.f32 %v321, %v505
        %507 = vmatmul.bf16.gmra.mxu0 %v438
        %v508 = vpop.f32.mrf.mxu0
        %v509 = vadd.f32 %v321, %v508
        %v510 = vpop.f32.mrf.mxu0
        %v511 = vadd.f32 %v321, %v510
        %512 = vmatmul.bf16.gmra.mxu0 %v441
        %v513 = vpop.f32.mrf.mxu0
        %v514 = vadd.f32 %v321, %v513
        %v515 = vpop.f32.mrf.mxu0
        %v516 = vadd.f32 %v321, %v515
        %517 = vmatmul.bf16.gmra.mxu0 %v444
        %v518 = vpop.f32.mrf.mxu0
        %v519 = vadd.f32 %v321, %v518
        %v520 = vpop.f32.mrf.mxu0
        %v521 = vadd.f32 %v321, %v520
        %522 = vmatmul.bf16.gmra.mxu0 %v447
        %v523 = vpop.f32.mrf.mxu0
        %v524 = vadd.f32 %v321, %v523
        %v525 = vpop.f32.mrf.mxu0
        %v526 = vadd.f32 %v321, %v525
        %527 = vmatmul.bf16.gmra.mxu0 %v450
        %v528 = vpop.f32.mrf.mxu0
        %v529 = vadd.f32 %v321, %v528
        %v530 = vpop.f32.mrf.mxu0
        %v531 = vadd.f32 %v321, %v530
        %532 = vmatmul.bf16.gmra.mxu0 %v453
        %v533 = vpop.f32.mrf.mxu0
        %v534 = vadd.f32 %v321, %v533
        %v535 = vpop.f32.mrf.mxu0
        %v536 = vadd.f32 %v321, %v535
        %537 = vmatmul.bf16.gmra.mxu0 %v456
        %v538 = vpop.f32.mrf.mxu0
        %v539 = vadd.f32 %v321, %v538
        %v540 = vpop.f32.mrf.mxu0
        %v541 = vadd.f32 %v321, %v540
        %542 = vmatmul.bf16.gmra.mxu0 %v459
        %v543 = vpop.f32.mrf.mxu0
        %v544 = vadd.f32 %v321, %v543
        %v545 = vpop.f32.mrf.mxu0
        %v546 = vadd.f32 %v321, %v545
        %547 = vmatmul.bf16.gmra.mxu0 %v462
        %v548 = vpop.f32.mrf.mxu0
        %v549 = vadd.f32 %v321, %v548
        %v550 = vpop.f32.mrf.mxu0
        %v551 = vadd.f32 %v321, %v550
        %552 = vdwg.mxu0
        %v553 = vtanh.pop %v474
        %v554 = vtanh.pop %v476
        %v555 = vtanh.pop %v479
        %v556 = vtanh.pop %v481
        %v557 = vtanh.pop %v484
        %v558 = vtanh.pop %v486
        %v559 = vtanh.pop %v489
        %v560 = vtanh.pop %v491
        %v561 = vtanh.pop %v494
        %v562 = vtanh.pop %v496
        %v563 = vtanh.pop %v499
        %v564 = vtanh.pop %v501
        %v565 = vtanh.pop %v504
        %v566 = vtanh.pop %v506
        %v567 = vtanh.pop %v509
        %v568 = vtanh.pop %v511
        %v569 = vtanh.pop %v514
        %v570 = vtanh.pop %v516
        %v571 = vtanh.pop %v519
        %v572 = vtanh.pop %v521
        %v573 = vtanh.pop %v524
        %v574 = vtanh.pop %v526
        %v575 = vtanh.pop %v529
        %v576 = vtanh.pop %v531
        %v577 = vtanh.pop %v534
        %v578 = vtanh.pop %v536
        %v579 = vtanh.pop %v539
        %v580 = vtanh.pop %v541
        %v581 = vtanh.pop %v544
        %v582 = vtanh.pop %v546
        %v583 = vtanh.pop %v549
        %v584 = vtanh.pop %v551
        %v585 = vpack.c.bf16 %v554, %v553
        %v586 = vpack.c.bf16 %v556, %v555
        %v587 = vpack.c.bf16 %v558, %v557
        %v588 = vpack.c.bf16 %v560, %v559
        %v589 = vpack.c.bf16 %v562, %v561
        %v590 = vpack.c.bf16 %v564, %v563
        %v591 = vpack.c.bf16 %v566, %v565
        %v592 = vpack.c.bf16 %v568, %v567
        %v593 = vpack.c.bf16 %v570, %v569
        %v594 = vpack.c.bf16 %v572, %v571
        %v595 = vpack.c.bf16 %v574, %v573
        %v596 = vpack.c.bf16 %v576, %v575
        %v597 = vpack.c.bf16 %v578, %v577
        %v598 = vpack.c.bf16 %v580, %v579
        %v599 = vpack.c.bf16 %v582, %v581
        %v600 = vpack.c.bf16 %v584, %v583
        %v601 = vld [vmem:[%s3] sm:$0xf]
        %v602 = vld [vmem:[%s3 + $0x4] sm:$0xf]
        %v603 = vld [vmem:[%s3 + $0x8] sm:$0xf]
        %v604 = vld [vmem:[%s3 + $0xc] sm:$0xf]
        %v605 = vld [vmem:[%s3 + $0x10] sm:$0xf]
        %v606 = vld [vmem:[%s3 + $0x14] sm:$0xf]
        %v607 = vld [vmem:[%s3 + $0x18] sm:$0xf]
        %v608 = vld [vmem:[%s3 + $0x1c] sm:$0xf]
        %v609 = vld [vmem:[%s4] sm:$0x1]
        %v611 = vperm.slane %v609, 0
        %v621 = vunpack.c.l.b16 %v601
        %v622 = vunpack.c.l.b16 %v602
        %v623 = vunpack.c.l.b16 %v603
        %v624 = vunpack.c.l.b16 %v604
        %v625 = vunpack.c.l.b16 %v605
        %v626 = vunpack.c.l.b16 %v606
        %v627 = vunpack.c.l.b16 %v607
        %v628 = vunpack.c.l.b16 %v608
        %v629 = vpack.c.b16 %v622, %v621
        %v630 = vpack.c.b16 %v624, %v623
        %v631 = vpack.c.b16 %v626, %v625
        %v632 = vpack.c.b16 %v628, %v627
        %vm637 = vcmask 523264
        %v639 = vsel %vm637, %v585, 0
        %v642 = vsel %vm637, %v586, 0
        %v645 = vsel %vm637, %v587, 0
        %v648 = vsel %vm637, %v588, 0
        %v651 = vsel %vm637, %v589, 0
        %v654 = vsel %vm637, %v590, 0
        %v657 = vsel %vm637, %v591, 0
        %v660 = vsel %vm637, %v592, 0
        %v663 = vsel %vm637, %v593, 0
        %v666 = vsel %vm637, %v594, 0
        %v669 = vsel %vm637, %v595, 0
        %v672 = vsel %vm637, %v596, 0
        %v675 = vsel %vm637, %v597, 0
        %v678 = vsel %vm637, %v598, 0
        %v681 = vsel %vm637, %v599, 0
        %v684 = vsel %vm637, %v600, 0
        %686 = vmatpush.bf16.msra.mxu0 0
        %687 = vmatpush.bf16.msra.mxu0 0
        %688 = vmatpush.bf16.msra.mxu0 0
        %689 = vmatpush.bf16.msra.mxu0 0
        %690 = vmatpush.bf16.msra.mxu0 %v632
        %691 = vmatpush.bf16.msra.mxu0 %v631
        %692 = vmatpush.bf16.msra.mxu0 %v630
        %693 = vmatpush.bf16.msra.mxu0 %v629
        %694 = vmatmul.bf16.gmra.mxu0 %v639
        %v695 = vpop.f32.mrf.mxu0
        %v696 = vadd.f32 %v611, %v695
        %v697 = vpop.f32.mrf.mxu0
        %v698 = vadd.f32 %v611, %v697
        %699 = vmatmul.bf16.gmra.mxu0 %v642
        %v700 = vpop.f32.mrf.mxu0
        %v701 = vadd.f32 %v611, %v700
        %v702 = vpop.f32.mrf.mxu0
        %v703 = vadd.f32 %v611, %v702
        %704 = vmatmul.bf16.gmra.mxu0 %v645
        %v705 = vpop.f32.mrf.mxu0
        %v706 = vadd.f32 %v611, %v705
        %v707 = vpop.f32.mrf.mxu0
        %v708 = vadd.f32 %v611, %v707
        %709 = vmatmul.bf16.gmra.mxu0 %v648
        %v710 = vpop.f32.mrf.mxu0
        %v711 = vadd.f32 %v611, %v710
        %v712 = vpop.f32.mrf.mxu0
        %v713 = vadd.f32 %v611, %v712
        %714 = vmatmul.bf16.gmra.mxu0 %v651
        %v715 = vpop.f32.mrf.mxu0
        %v716 = vadd.f32 %v611, %v715
        %v717 = vpop.f32.mrf.mxu0
        %v718 = vadd.f32 %v611, %v717
        %719 = vmatmul.bf16.gmra.mxu0 %v654
        %v720 = vpop.f32.mrf.mxu0
        %v721 = vadd.f32 %v611, %v720
        %v722 = vpop.f32.mrf.mxu0
        %v723 = vadd.f32 %v611, %v722
        %724 = vmatmul.bf16.gmra.mxu0 %v657
        %v725 = vpop.f32.mrf.mxu0
        %v726 = vadd.f32 %v611, %v725
        %v727 = vpop.f32.mrf.mxu0
        %v728 = vadd.f32 %v611, %v727
        %729 = vmatmul.bf16.gmra.mxu0 %v660
        %v730 = vpop.f32.mrf.mxu0
        %v731 = vadd.f32 %v611, %v730
        %v732 = vpop.f32.mrf.mxu0
        %v733 = vadd.f32 %v611, %v732
        %734 = vmatmul.bf16.gmra.mxu0 %v663
        %v735 = vpop.f32.mrf.mxu0
        %v736 = vadd.f32 %v611, %v735
        %v737 = vpop.f32.mrf.mxu0
        %v738 = vadd.f32 %v611, %v737
        %739 = vmatmul.bf16.gmra.mxu0 %v666
        %v740 = vpop.f32.mrf.mxu0
        %v741 = vadd.f32 %v611, %v740
        %v742 = vpop.f32.mrf.mxu0
        %v743 = vadd.f32 %v611, %v742
        %744 = vmatmul.bf16.gmra.mxu0 %v669
        %v745 = vpop.f32.mrf.mxu0
        %v746 = vadd.f32 %v611, %v745
        %v747 = vpop.f32.mrf.mxu0
        %v748 = vadd.f32 %v611, %v747
        %749 = vmatmul.bf16.gmra.mxu0 %v672
        %v750 = vpop.f32.mrf.mxu0
        %v751 = vadd.f32 %v611, %v750
        %v752 = vpop.f32.mrf.mxu0
        %v753 = vadd.f32 %v611, %v752
        %754 = vmatmul.bf16.gmra.mxu0 %v675
        %v755 = vpop.f32.mrf.mxu0
        %v756 = vadd.f32 %v611, %v755
        %v757 = vpop.f32.mrf.mxu0
        %v758 = vadd.f32 %v611, %v757
        %759 = vmatmul.bf16.gmra.mxu0 %v678
        %v760 = vpop.f32.mrf.mxu0
        %v761 = vadd.f32 %v611, %v760
        %v762 = vpop.f32.mrf.mxu0
        %v763 = vadd.f32 %v611, %v762
        %764 = vmatmul.bf16.gmra.mxu0 %v681
        %v765 = vpop.f32.mrf.mxu0
        %v766 = vadd.f32 %v611, %v765
        %v767 = vpop.f32.mrf.mxu0
        %v768 = vadd.f32 %v611, %v767
        %769 = vmatmul.bf16.gmra.mxu0 %v684
        %v770 = vpop.f32.mrf.mxu0
        %v771 = vadd.f32 %v611, %v770
        %v772 = vpop.f32.mrf.mxu0
        %v773 = vadd.f32 %v611, %v772
        %774 = vdwg.mxu0
        %v775 = vtanh.pop %v696
        %v776 = vtanh.pop %v698
        %v777 = vtanh.pop %v701
        %v778 = vtanh.pop %v703
        %v779 = vtanh.pop %v706
        %v780 = vtanh.pop %v708
        %v781 = vtanh.pop %v711
        %v782 = vtanh.pop %v713
        %v783 = vtanh.pop %v716
        %v784 = vtanh.pop %v718
        %v785 = vtanh.pop %v721
        %v786 = vtanh.pop %v723
        %v787 = vtanh.pop %v726
        %v788 = vtanh.pop %v728
        %v789 = vtanh.pop %v731
        %v790 = vtanh.pop %v733
        %v791 = vtanh.pop %v736
        %v792 = vtanh.pop %v738
        %v793 = vtanh.pop %v741
        %v794 = vtanh.pop %v743
        %v795 = vtanh.pop %v746
        %v796 = vtanh.pop %v748
        %v797 = vtanh.pop %v751
        %v798 = vtanh.pop %v753
        %v799 = vtanh.pop %v756
        %v800 = vtanh.pop %v758
        %v801 = vtanh.pop %v761
        %v802 = vtanh.pop %v763
        %v803 = vtanh.pop %v766
        %v804 = vtanh.pop %v768
        %v805 = vtanh.pop %v771
        %v806 = vtanh.pop %v773
        %v807 = vld [vmem:[%s5] sm:$0x1]
        %v808 = vld [vmem:[#allocation2] sm:$0x1]
        %810 = vset.pattern.permute.xlu0 0
        %811 = vperm.xlu0 %810, %v808
        %v812 = vpop.permute.xlu0 %811
        %v814 = vperm.slane %v812, 0
        %v816 = vsel %vm415, %v807, 0
        %v819 = vsel %vm415, %v775, 0
        %v822 = vsel %vm415, %v776, 0
        %v825 = vsel %vm415, %v777, 0
        %v828 = vsel %vm415, %v778, 0
        %v831 = vsel %vm415, %v779, 0
        %v834 = vsel %vm415, %v780, 0
        %v837 = vsel %vm415, %v781, 0
        %v840 = vsel %vm415, %v782, 0
        %v843 = vsel %vm415, %v783, 0
        %v846 = vsel %vm415, %v784, 0
        %v849 = vsel %vm415, %v785, 0
        %v852 = vsel %vm415, %v786, 0
        %v855 = vsel %vm415, %v787, 0
        %v858 = vsel %vm415, %v788, 0
        %v861 = vsel %vm415, %v789, 0
        %v864 = vsel %vm415, %v790, 0
        %v867 = vsel %vm415, %v791, 0
        %v870 = vsel %vm415, %v792, 0
        %v873 = vsel %vm415, %v793, 0
        %v876 = vsel %vm415, %v794, 0
        %v879 = vsel %vm415, %v795, 0
        %v882 = vsel %vm415, %v796, 0
        %v885 = vsel %vm415, %v797, 0
        %v888 = vsel %vm415, %v798, 0
        %v891 = vsel %vm415, %v799, 0
        %v894 = vsel %vm415, %v800, 0
        %v897 = vsel %vm415, %v801, 0
        %v900 = vsel %vm415, %v802, 0
        %v903 = vsel %vm415, %v803, 0
        %v906 = vsel %vm415, %v804, 0
        %v909 = vsel %vm415, %v805, 0
        %v912 = vsel %vm415, %v806, 0
        %914 = vmatpush.xpose.msra.mxu0 %v864
        %915 = vmatpush.xpose.msra.mxu0 %v861
        %916 = vmatpush.xpose.msra.mxu0 %v858
        %917 = vmatpush.xpose.msra.mxu0 %v855
        %918 = vmatpush.xpose.msra.mxu0 %v852
        %919 = vmatpush.xpose.msra.mxu0 %v849
        %920 = vmatpush.xpose.msra.mxu0 %v846
        %921 = vmatpush.xpose.msra.mxu0 %v843
        %922 = vmatpush.xpose.msra.mxu0 %v840
        %923 = vmatpush.xpose.msra.mxu0 %v837
        %924 = vmatpush.xpose.msra.mxu0 %v834
        %925 = vmatpush.xpose.msra.mxu0 %v831
        %926 = vmatpush.xpose.msra.mxu0 %v828
        %927 = vmatpush.xpose.msra.mxu0 %v825
        %928 = vmatpush.xpose.msra.mxu0 %v822
        %929 = vmatpush.xpose.msra.mxu0 %v819
        %930 = vmatmul.f32.gmra.mxu0 %v816
        %v931 = vpop.f32.mrf.mxu0
        %v932 = vadd.f32 %v814, %v931
        %933 = vdwg.mxu0
        %934 = vmatpush.xpose.msra.mxu0 %v912
        %935 = vmatpush.xpose.msra.mxu0 %v909
        %936 = vmatpush.xpose.msra.mxu0 %v906
        %937 = vmatpush.xpose.msra.mxu0 %v903
        %938 = vmatpush.xpose.msra.mxu0 %v900
        %939 = vmatpush.xpose.msra.mxu0 %v897
        %940 = vmatpush.xpose.msra.mxu0 %v894
        %941 = vmatpush.xpose.msra.mxu0 %v891
        %942 = vmatpush.xpose.msra.mxu0 %v888
        %943 = vmatpush.xpose.msra.mxu0 %v885
        %944 = vmatpush.xpose.msra.mxu0 %v882
        %945 = vmatpush.xpose.msra.mxu0 %v879
        %946 = vmatpush.xpose.msra.mxu0 %v876
        %947 = vmatpush.xpose.msra.mxu0 %v873
        %948 = vmatpush.xpose.msra.mxu0 %v870
        %949 = vmatpush.xpose.msra.mxu0 %v867
        %950 = vmatmul.f32.gmra.mxu0 %v816
        %v951 = vpop.f32.mrf.mxu0
        %v952 = vadd.f32 %v814, %v951
        %953 = vdwg.mxu0
        %v954 = vxor.u32 %v932, 2147483648
        %v955 = vxor.u32 %v952, 2147483648
        %v956 = vmul.f32 %v954, 1.442695
        %v957 = vpow.pop %v956
        %v958 = vmul.f32 %v955, 1.442695
        %v959 = vpow.pop %v958
        %v960 = vadd.f32 %v957, 1.0
        %v961 = vadd.f32 %v959, 1.0
        %v962 = vrcp.pop %v960
        %v963 = vmul.f32 %v960, %v962
        %v964 = vsub.f32 1.0, %v963
        %v965 = vmul.f32 %v962, %v964
        %v966 = vadd.f32 %v962, %v965
        %vm967 = vweird.f32 %v960
        %vm968 = vweird.f32 %v962
        %vm969 = vmor %vm967, %vm968
        %v970 = vsel %vm969, %v962, %v966
        %v971 = vand.u32 2147483647, %v960
        %vm972 = vcmp.eq.f32.partialorder %v971, 8.507059e+37
        %v973 = vand.u32 %v960, 2147483648
        %v974 = vor.u32 1.1754944e-38, %v973
        %v975 = vsel %vm972, %v974, %v970
        %v976 = vmul.f32 1.0, %v975
        %v977 = vrcp.pop %v961
        %v978 = vmul.f32 %v961, %v977
        %v979 = vsub.f32 1.0, %v978
        %v980 = vmul.f32 %v977, %v979
        %v981 = vadd.f32 %v977, %v980
        %vm982 = vweird.f32 %v961
        %vm983 = vweird.f32 %v977
        %vm984 = vmor %vm982, %vm983
        %v985 = vsel %vm984, %v977, %v981
        %v986 = vand.u32 2147483647, %v961
        %vm987 = vcmp.eq.f32.partialorder %v986, 8.507059e+37
        %v988 = vand.u32 %v961, 2147483648
        %v989 = vor.u32 1.1754944e-38, %v988
        %v990 = vsel %vm987, %v989, %v985
        %v991 = vmul.f32 1.0, %v990
        %v994 = vrot.slane %v991, 7
        %vm995 = vcmask 1040384
        %v996 = vsel %vm995, %v976, %v994
        %v998 = vlaneseq
        %vm999 = vcmp.ge.s32.totalorder %v998, 0
        %vm1000 = vcmp.lt.s32.totalorder %v998, 256
        %vm1001 = vmand %vm999, %vm1000
        %1002 = vst.msk [vmem:[%s274] sm:$0x3] %vm1001, %v996
        %s1003 = sand.u32 %s183, 1
        %s1004 = scalar_lea.sflag [#allocation4], %s1003
        %s1005 = sand.u32 %s183, 1
        %s1006 = smul.addr %s1005, 2
        %s1007 = scalar_lea.vmem [#allocation3], %s1006
        // Predicated region
        $region49: #{net_unmask_forward.1} parent=47 // pred_check
          %p1008 = pneg %p193
        $region50: #{net_unmask_forward.1} parent=47 // pred_check_branch
          %1010 = sbr.rel (%p1008) target = $region52
        $region51: #{net_unmask_forward.1} parent=47 // pred_region
          %s1011 = smul.u32 2, %s23
          %1013 = vsyncadd %s1004, 0
          %s1014 = scalar_lea.hbm %s7, %s1011
          %s1016 = sshll.u32 %s1007, 4
          %s1017 = int_to_ptr.vmem [resolvable:$true] %s1016
          %s1018 = sshll.u32 %s1014, 4
          %s1019 = int_to_ptr.hbm [resolvable:$true] %s1018
          %1021 = dma.vmem_to_hbm [thread:$0]  %s1017, 32, %s1019, %s1004
        $region52: #{net_unmask_forward.1} parent=47 // pred_fallthru
          _
      $region48: #{net_unmask_forward.1} parent=5 // pred_fallthru
        _
      %p1022 = scmp.le.s32.totalorder 2, %s18
      // Predicated region
      $region53: #{net_unmask_forward.1} parent=5 // pred_check
        %p1023 = pneg %p1022
      $region54: #{net_unmask_forward.1} parent=5 // pred_check_branch
        %1025 = sbr.rel (%p1023) target = $region56
      $region55: #{net_unmask_forward.1} parent=5 // pred_region
        %s1026 = ssub.s32 %s18, 2
        // Predicated region
        $region57: #{net_unmask_forward.1} parent=55 // pred_check
          %p1027 = pneg %p199
        $region58: #{net_unmask_forward.1} parent=55 // pred_check_branch
          %1029 = sbr.rel (%p1027) target = $region60
        $region59: #{net_unmask_forward.1} parent=55 // pred_region
          %s1030 = sand.u32 %s184, 1
          %s1031 = scalar_lea.sflag [#allocation4], %s1030
          %s1032 = sand.u32 %s184, 1
          %s1033 = smul.addr %s1032, 2
          %s1034 = scalar_lea.vmem [#allocation3], %s1033
          %1036 = dma.done %s1031, 32
        $region60: #{net_unmask_forward.1} parent=55 // pred_fallthru
          _
      $region56: #{net_unmask_forward.1} parent=5 // pred_fallthru
        _
    $region6: #{net_unmask_forward.1} parent=1 // loop_footer
      %s22 = sadd.s32 1, %s18
    $region7: #{net_unmask_forward.1} parent=1 // loop_footer_branch
      %17 = sbr.rel target = $region3
    $region8: #{net_unmask_forward.1} parent=1 // loop_exit
      _
    %1037 = vsyncpa [#allocation4], 1
    %s1038 = scalar_lea.sflag [#allocation4], 1
    %1039 = vsyncpa %s1038, 1

</llo_original>
